<compile_context>
chip_gen: v6e
topology: v6e:2x2x1
jax: 0.10.0
libtpu: 0.0.40
codegen_flags: <defaults>
</compile_context>

<pallas_src>
import functools

import jax
import jax.numpy as jnp
from jax.experimental import pallas as pl
from jax.experimental.pallas import tpu as pltpu

IN_FEATURES = 165
OUT_FEATURES = 3
K_PADDED = 256          # 165 lanes already occupy 2 vregs; make it explicit/aligned.
DEFAULT_BATCH_TILE = 1024


def _round_up(n, m):
    return ((n + m - 1) // m) * m


def _logreg_kernel(x_ref, w_ref, b_ref, o_ref):
    # x_ref: (TB, 256)  w_ref: (256, 3)  b_ref: (1, 3)  o_ref: (TB, 3)
    logits = jnp.dot(x_ref[...], w_ref[...], preferred_element_type=jnp.float32)
    logits = logits + b_ref[...]
    o_ref[...] = jax.nn.sigmoid(logits).astype(o_ref.dtype)


@functools.partial(jax.jit, static_argnames=("batch_tile",))
def logistic_regression(x, w, b, *, batch_tile=DEFAULT_BATCH_TILE):
    """x: (B, 165) f32; w: (3, 165) f32 (torch Linear layout); b: (3,) f32 -> (B, 3) f32."""
    B = x.shape[0]

    # Pick a batch tile: multiple of 8 sublanes, no larger than needed for small B.
    tb = min(batch_tile, _round_up(B, 8))
    b_padded = _round_up(B, tb)
    grid_b = b_padded // tb

    # One-time layout prep (outside the kernel, fused by XLA):
    #   pad batch rows to the tile boundary, pad K to 256, pre-transpose W.
    x_p = jnp.pad(
        x.astype(jnp.float32),
        ((0, b_padded - B), (0, K_PADDED - IN_FEATURES)),
    )                                                    # (Bp, 256)
    w_t = jnp.pad(
        w.astype(jnp.float32).T,
        ((0, K_PADDED - IN_FEATURES), (0, 0)),
    )                                                    # (256, 3)
    b2d = b.astype(jnp.float32).reshape(1, OUT_FEATURES)  # (1, 3)

    cost = pl.CostEstimate(
        flops=2 * B * IN_FEATURES * OUT_FEATURES,
        transcendentals=B * OUT_FEATURES,
        bytes_accessed=4 * (B * IN_FEATURES + IN_FEATURES * OUT_FEATURES
                            + OUT_FEATURES + B * OUT_FEATURES),
    )

    out_padded = pl.pallas_call(
        _logreg_kernel,
        out_shape=jax.ShapeDtypeStruct((b_padded, OUT_FEATURES), jnp.float32),
        grid_spec=pltpu.PrefetchScalarGridSpec(
            num_scalar_prefetch=0,
            grid=(grid_b,),
            in_specs=[
                # x: tiled over the batch axis (double-buffered by Pallas).
                pl.BlockSpec((tb, K_PADDED), lambda i: (i, 0)),
                # W / bias: tiny, constant, VMEM-resident across all steps.
                pl.BlockSpec((K_PADDED, OUT_FEATURES), lambda i: (0, 0)),
                pl.BlockSpec((1, OUT_FEATURES), lambda i: (0, 0)),
            ],
            out_specs=pl.BlockSpec((tb, OUT_FEATURES), lambda i: (i, 0)),
        ),
        compiler_params=pltpu.CompilerParams(
            dimension_semantics=("parallel",),   # megacore sharding on v7x
        ),
        cost_estimate=cost,
    )(x_p, w_t, b2d)

    return out_padded[:B]


def _ref_forward(x, w, b):
    return jax.nn.sigmoid(x @ w.T + b)


if __name__ == "__main__":
    key = jax.random.PRNGKey(0)
    kx, kw, kb = jax.random.split(key, 3)

    batch = 8
    x = jax.random.normal(kx, (batch, IN_FEATURES), dtype=jnp.float32)

    # Deterministic params matching torch.nn.Linear shapes (uniform(-k, k), k=1/sqrt(fan_in)).
    k = 1.0 / (IN_FEATURES ** 0.5)
    w = jax.random.uniform(kw, (OUT_FEATURES, IN_FEATURES),
                           minval=-k, maxval=k, dtype=jnp.float32)
    b = jax.random.uniform(kb, (OUT_FEATURES,),
                           minval=-k, maxval=k, dtype=jnp.float32)

    out = logistic_regression(x, w, b)
    out = jax.block_until_ready(out)

    ref = _ref_forward(x, w, b)
    assert out.shape == (batch, OUT_FEATURES), out.shape
    assert jnp.allclose(out, ref, atol=1e-5, rtol=1e-5), "mismatch vs reference"

    print("KERNEL_OK")
</pallas_src>

<mosaic_0001>
module attributes {stable_mosaic.version = 11 : i64} {
  func.func @_logreg_kernel(%arg0: i32, %arg1: memref<8x256xf32, #tpu.memory_space<vmem>>, %arg2: memref<256x3xf32, #tpu.memory_space<vmem>>, %arg3: memref<1x3xf32, #tpu.memory_space<vmem>>, %arg4: memref<8x3xf32, #tpu.memory_space<vmem>>) attributes {dimension_semantics = [#tpu.dimension_semantics<parallel>], iteration_bounds = array<i64: 1>, scalar_prefetch = 0 : i64, scratch_operands = 0 : i64, tpu.core_type = #tpu.core_type<tc>, window_params = [{transform_indices = @transform_0, window_bounds = array<i64: 8, 256>}, {pipeline_mode = #tpu.pipeline_mode<synchronous>, transform_indices = @transform_1, window_bounds = array<i64: 256, 3>}, {pipeline_mode = #tpu.pipeline_mode<synchronous>, transform_indices = @transform_2, window_bounds = array<i64: 1, 3>}, {transform_indices = @transform_3, window_bounds = array<i64: 8, 3>}]} {
    %c0 = arith.constant 0 : index
    %c0_0 = arith.constant 0 : index
    %0 = vector.load %arg1[%c0, %c0_0] : memref<8x256xf32, #tpu.memory_space<vmem>>, vector<8x256xf32>
    %c0_1 = arith.constant 0 : index
    %c0_2 = arith.constant 0 : index
    %1 = vector.load %arg2[%c0_1, %c0_2] : memref<256x3xf32, #tpu.memory_space<vmem>>, vector<256x3xf32>
    %cst = arith.constant dense<0.000000e+00> : vector<8x3xf32>
    %2 = tpu.matmul %0, %1, %cst {dimension_numbers = #tpu.dot_dimension_numbers<[1], [0], [0], [1], [0, 0, 1, 1], [], []>} : vector<8x256xf32>, vector<256x3xf32>, vector<8x3xf32> -> vector<8x3xf32>
    %c0_3 = arith.constant 0 : index
    %c0_4 = arith.constant 0 : index
    %3 = vector.load %arg3[%c0_3, %c0_4] : memref<1x3xf32, #tpu.memory_space<vmem>>, vector<1x3xf32>
    %4 = vector.broadcast %3 : vector<1x3xf32> to vector<8x3xf32>
    %5 = arith.addf %2, %4 : vector<8x3xf32>
    %6 = arith.negf %5 : vector<8x3xf32>
    %7 = math.exp %6 : vector<8x3xf32>
    %cst_5 = arith.constant 1.000000e+00 : f32
    %8 = vector.broadcast %cst_5 : f32 to vector<8x3xf32>
    %9 = arith.addf %8, %7 : vector<8x3xf32>
    %10 = arith.divf %8, %9 : vector<8x3xf32>
    %c0_6 = arith.constant 0 : index
    %c0_7 = arith.constant 0 : index
    %11 = vector.load %arg4[%c0_6, %c0_7] : memref<8x3xf32, #tpu.memory_space<vmem>>, vector<8x3xf32>
    tpu.vector_store %arg4[%c0_6, %c0_7], %10 {strides = array<i32>} : memref<8x3xf32, #tpu.memory_space<vmem>>, vector<8x3xf32>,
    return
  }
  func.func @transform_0(%arg0: i32) -> (i32, i32) {
    %c0_i32 = arith.constant 0 : i32
    %c0_i32_0 = arith.constant 0 : i32
    return %arg0, %c0_i32 : i32, i32
  }
  func.func @transform_1(%arg0: i32) -> (i32, i32) {
    %c0_i32 = arith.constant 0 : i32
    %c0_i32_0 = arith.constant 0 : i32
    %c0_i32_1 = arith.constant 0 : i32
    return %c0_i32, %c0_i32_0 : i32, i32
  }
  func.func @transform_2(%arg0: i32) -> (i32, i32) {
    %c0_i32 = arith.constant 0 : i32
    %c0_i32_0 = arith.constant 0 : i32
    %c0_i32_1 = arith.constant 0 : i32
    return %c0_i32, %c0_i32_0 : i32, i32
  }
  func.func @transform_3(%arg0: i32) -> (i32, i32) {
    %c0_i32 = arith.constant 0 : i32
    %c0_i32_0 = arith.constant 0 : i32
    return %arg0, %c0_i32 : i32, i32
  }
}

</mosaic_0001>

<llo_original>
// kernel: logistic_regression.1
$region0: #{logistic_regression.1}
  #allocation0 [shape = 'u32[]', space=smem, size = 0x4, offset = 0x4, fixed_abs, tag = 'smem constant byte address 0x4 - core index']
  #allocation1 [shape = 'u32[144,128]{1,0:T(1,128)}', space=vmem, size = 0x12000, scoped, tag = 'internal scratch']
  %s0 = inlined_call_operand.vmem [shape: f32[8,256], index: 0, kind: input, shape index: {}]
  %s1 = inlined_call_operand.vmem [shape: f32[256,3], index: 1, kind: input, shape index: {}]
  %s2 = inlined_call_operand.vmem [shape: f32[1,3], index: 2, kind: input, shape index: {}]
  %s3 = inlined_call_operand.vmem [shape: f32[8,3], index: 3, kind: output, shape index: {}]
  %s4 = sld [smem:[#allocation0]]
  $region22: #{logistic_regression.1} parent=0
    _
  %s6 = ssub.s32 1, %s4
  %s7 = scalar_select 0, %s6, %s4
  // Predicated region
  $region2: #{logistic_regression.1} parent=0 // pred_check
    _
  $region3: #{logistic_regression.1} parent=0 // pred_check_branch
    %9 = sbr.rel (0) target = $region5
  $region4: #{logistic_regression.1} parent=0 // pred_region
    _
  $region5: #{logistic_regression.1} parent=0 // pred_fallthru
    _
  // Predicated region
  $region6: #{logistic_regression.1} parent=0 // pred_check
    _
  $region7: #{logistic_regression.1} parent=0 // pred_check_branch
    %11 = sbr.rel (0) target = $region9
  $region8: #{logistic_regression.1} parent=0 // pred_region
    _
  $region9: #{logistic_regression.1} parent=0 // pred_fallthru
    _
  // Predicated region
  $region10: #{logistic_regression.1} parent=0 // pred_check
    _
  $region11: #{logistic_regression.1} parent=0 // pred_check_branch
    %13 = sbr.rel (0) target = $region13
  $region12: #{logistic_regression.1} parent=0 // pred_region
    _
  $region13: #{logistic_regression.1} parent=0 // pred_fallthru
    _
  %v14 = vld [vmem:[%s0] sm:$0xff]
  %v15 = vld [vmem:[%s0 + $0x8] sm:$0xff]
  %v16 = vld [vmem:[%s1] sm:$0xff]
  %v17 = vld [vmem:[%s1 + $0x8] sm:$0xff]
  %v18 = vld [vmem:[%s1 + $0x10] sm:$0xff]
  %v19 = vld [vmem:[%s1 + $0x18] sm:$0xff]
  %v20 = vld [vmem:[%s1 + $0x20] sm:$0xff]
  %v21 = vld [vmem:[%s1 + $0x28] sm:$0xff]
  %v22 = vld [vmem:[%s1 + $0x30] sm:$0xff]
  %v23 = vld [vmem:[%s1 + $0x38] sm:$0xff]
  %v24 = vld [vmem:[%s1 + $0x40] sm:$0xff]
  %v25 = vld [vmem:[%s1 + $0x48] sm:$0xff]
  %v26 = vld [vmem:[%s1 + $0x50] sm:$0xff]
  %v27 = vld [vmem:[%s1 + $0x58] sm:$0xff]
  %v28 = vld [vmem:[%s1 + $0x60] sm:$0xff]
  %v29 = vld [vmem:[%s1 + $0x68] sm:$0xff]
  %v30 = vld [vmem:[%s1 + $0x70] sm:$0xff]
  %v31 = vld [vmem:[%s1 + $0x78] sm:$0xff]
  %v32 = vld [vmem:[%s1 + $0x80] sm:$0xff]
  %v33 = vld [vmem:[%s1 + $0x88] sm:$0xff]
  %v34 = vld [vmem:[%s1 + $0x90] sm:$0xff]
  %v35 = vld [vmem:[%s1 + $0x98] sm:$0xff]
  %v36 = vld [vmem:[%s1 + $0xa0] sm:$0xff]
  %v37 = vld [vmem:[%s1 + $0xa8] sm:$0xff]
  %v38 = vld [vmem:[%s1 + $0xb0] sm:$0xff]
  %v39 = vld [vmem:[%s1 + $0xb8] sm:$0xff]
  %v40 = vld [vmem:[%s1 + $0xc0] sm:$0xff]
  %v41 = vld [vmem:[%s1 + $0xc8] sm:$0xff]
  %v42 = vld [vmem:[%s1 + $0xd0] sm:$0xff]
  %v43 = vld [vmem:[%s1 + $0xd8] sm:$0xff]
  %v44 = vld [vmem:[%s1 + $0xe0] sm:$0xff]
  %v45 = vld [vmem:[%s1 + $0xe8] sm:$0xff]
  %v46 = vld [vmem:[%s1 + $0xf0] sm:$0xff]
  %v47 = vld [vmem:[%s1 + $0xf8] sm:$0xff]
  %v48 = vld [vmem:[%s2] sm:$0x1]
  %v50 = vlaneseq
  %v51 = vshrl.u32 %v50, 7
  %v52 = vsub.s32 0, %v51
  %v53 = vrot.slane %v48, %v52
  %55 = vmatprep.subr.mxu0 0.0
  %56 = vmatpush1.msra.mxu0 %v31
  %57 = vmatprep.subr.mxu0 0.0
  %58 = vmatpush1.msra.mxu0 %v30
  %59 = vmatprep.subr.mxu0 0.0
  %60 = vmatpush1.msra.mxu0 %v29
  %61 = vmatprep.subr.mxu0 0.0
  %62 = vmatpush1.msra.mxu0 %v28
  %63 = vmatprep.subr.mxu0 0.0
  %64 = vmatpush1.msra.mxu0 %v27
  %65 = vmatprep.subr.mxu0 0.0
  %66 = vmatpush1.msra.mxu0 %v26
  %67 = vmatprep.subr.mxu0 0.0
  %68 = vmatpush1.msra.mxu0 %v25
  %69 = vmatprep.subr.mxu0 0.0
  %70 = vmatpush1.msra.mxu0 %v24
  %71 = vmatprep.subr.mxu0 0.0
  %72 = vmatpush1.msra.mxu0 %v23
  %73 = vmatprep.subr.mxu0 0.0
  %74 = vmatpush1.msra.mxu0 %v22
  %75 = vmatprep.subr.mxu0 0.0
  %76 = vmatpush1.msra.mxu0 %v21
  %77 = vmatprep.subr.mxu0 0.0
  %78 = vmatpush1.msra.mxu0 %v20
  %79 = vmatprep.subr.mxu0 0.0
  %80 = vmatpush1.msra.mxu0 %v19
  %81 = vmatprep.subr.mxu0 0.0
  %82 = vmatpush1.msra.mxu0 %v18
  %83 = vmatprep.subr.mxu0 0.0
  %84 = vmatpush1.msra.mxu0 %v17
  %85 = vmatprep.subr.mxu0 0.0
  %86 = vmatpush1.msra.mxu0 %v16
  %87 = vmatprep.subr.mxu0 0.0
  %88 = vmatpush2.msra.mxu0 %v47
  %89 = vmatprep.subr.mxu0 0.0
  %90 = vmatpush2.msra.mxu0 %v46
  %91 = vmatprep.subr.mxu0 0.0
  %92 = vmatpush2.msra.mxu0 %v45
  %93 = vmatprep.subr.mxu0 0.0
  %94 = vmatpush2.msra.mxu0 %v44
  %95 = vmatprep.subr.mxu0 0.0
  %96 = vmatpush2.msra.mxu0 %v43
  %97 = vmatprep.subr.mxu0 0.0
  %98 = vmatpush2.msra.mxu0 %v42
  %99 = vmatprep.subr.mxu0 0.0
  %100 = vmatpush2.msra.mxu0 %v41
  %101 = vmatprep.subr.mxu0 0.0
  %102 = vmatpush2.msra.mxu0 %v40
  %103 = vmatprep.subr.mxu0 0.0
  %104 = vmatpush2.msra.mxu0 %v39
  %105 = vmatprep.subr.mxu0 0.0
  %106 = vmatpush2.msra.mxu0 %v38
  %107 = vmatprep.subr.mxu0 0.0
  %108 = vmatpush2.msra.mxu0 %v37
  %109 = vmatprep.subr.mxu0 0.0
  %110 = vmatpush2.msra.mxu0 %v36
  %111 = vmatprep.subr.mxu0 0.0
  %112 = vmatpush2.msra.mxu0 %v35
  %113 = vmatprep.subr.mxu0 0.0
  %114 = vmatpush2.msra.mxu0 %v34
  %115 = vmatprep.subr.mxu0 0.0
  %116 = vmatpush2.msra.mxu0 %v33
  %117 = vmatprep.subr.mxu0 0.0
  %118 = vmatpush2.msra.mxu0 %v32
  %119 = vmatprep.mubr.f32.mxu0 %v15
  %120 = vmatmul.mubr.f32.gmra.mxu0 %v14
  %v121 = vpop.f32.mrf.mxu0
  %v122 = vadd.f32 %v53, %v121
  %v123 = vpop.f32.mrf.mxu0
  %124 = vdwg.mxu0
  %v125 = vxor.u32 %v122, 2147483648
  %v126 = vmul.f32 %v125, 1.442695
  %v127 = vpow.pop %v126
  %v128 = vadd.f32 %v127, 1.0
  %v129 = vrcp.pop %v128
  %v130 = vmul.f32 1.0, %v129
  %vm131 = vcmask 23552
  %132 = vst.msk [vmem:[%s3] sm:$0xff] %vm131, %v130
  // Predicated region
  $region14: #{logistic_regression.1} parent=0 // pred_check
    _
  $region15: #{logistic_regression.1} parent=0 // pred_check_branch
    %134 = sbr.rel (0) target = $region17
  $region16: #{logistic_regression.1} parent=0 // pred_region
    _
  $region17: #{logistic_regression.1} parent=0 // pred_fallthru
    _
  // Predicated region
  $region18: #{logistic_regression.1} parent=0 // pred_check
    _
  $region19: #{logistic_regression.1} parent=0 // pred_check_branch
    %136 = sbr.rel (0) target = $region21
  $region20: #{logistic_regression.1} parent=0 // pred_region
    _
  $region21: #{logistic_regression.1} parent=0 // pred_fallthru
    _

</llo_original>
